<compile_context>
chip_gen: v7x
topology: tpu7x:2x2x1
jax: 0.10.0
libtpu: 0.0.40
codegen_flags: <defaults>
</compile_context>

<pallas_src>
import jax
import jax.numpy as jnp
import numpy as np
from jax import lax
from jax.experimental import pallas as pl
from jax.experimental.pallas import tpu as pltpu


_PAD = 3      # Conv3d padding=(3, 0, 0)
_KTAP = 7     # Conv3d kernel_size=(7, 1, 1)

# Keep double-buffered blocks well under the smallest per-TensorCore VMEM
# (v7x: 64 MiB) and tell Mosaic the limit explicitly (v5e default is 16 MiB).
_VMEM_LIMIT_BYTES = 48 * 1024 * 1024
_BLOCK_BUDGET_BYTES = 24 * 1024 * 1024


# ----------------------------- Pallas kernels ------------------------------


def _spc_dense_kernel(x_ref, w_ref, y_ref):
    """Dense banded conv: one (M,K)@(K,TL) matmul per grid step.

    x_ref: (K, TL)   input lane tile (K = Cin*D)
    w_ref: (M, K)    banded conv weight, resident (constant index_map)
    y_ref: (M, TL)   output lane tile (M = Cout*D)
    """
    y_ref[...] = jnp.dot(w_ref[...], x_ref[...],
                         precision=lax.Precision.HIGHEST,
                         preferred_element_type=jnp.float32)


def _spc_band_kernel(w_ref, xm_ref, xc_ref, xp_ref, y_ref):
    """Band-tiled conv (Cin == 1): output depth tile t only contracts the
    three neighbouring TD-row input blocks (t-1, t, t+1).

    w_ref:  (3, Cout*TD, TD)  per-tile weight slices (boundary slices zeroed)
    x*_ref: (TD, TL)          input depth blocks t-1 / t / t+1 (clamped)
    y_ref:  (Cout, TD, TL)    output tile
    """
    acc = jnp.dot(w_ref[0], xm_ref[...],
                  precision=lax.Precision.HIGHEST,
                  preferred_element_type=jnp.float32)
    acc += jnp.dot(w_ref[1], xc_ref[...],
                   precision=lax.Precision.HIGHEST,
                   preferred_element_type=jnp.float32)
    acc += jnp.dot(w_ref[2], xp_ref[...],
                   precision=lax.Precision.HIGHEST,
                   preferred_element_type=jnp.float32)
    y_ref[...] = acc.reshape(y_ref.shape)


# ------------------------------ host helpers -------------------------------


def _dense_band_weight(weight, D):
    """(Cout, Cin, 7, 1, 1) -> (Cout*D, Cin*D) banded matrix.

    Wb[co*D + d_out, ci*D + d_in] = weight[co, ci, d_in - d_out + 3]
    (zero outside the 7-tap band), matching PyTorch cross-correlation with
    zero padding 3 along D.
    """
    w = weight[:, :, :, 0, 0].astype(jnp.float32)               # (Cout, Cin, 7)
    Cout, Cin, K = w.shape
    d_out = jnp.arange(D)[:, None]
    d_in = jnp.arange(D)[None, :]
    k_idx = d_in - d_out + _PAD                                  # (D, D)
    valid = (k_idx >= 0) & (k_idx < K)
    k_clip = jnp.clip(k_idx, 0, K - 1)
    band = jnp.where(valid[None, None], w[:, :, k_clip], 0.0)    # (Cout,Cin,D,D)
    return jnp.transpose(band, (0, 2, 1, 3)).reshape(Cout * D, Cin * D)


def _tiled_band_weight(weight, D, TD):
    """(Cout, 1, 7, 1, 1) -> (T, 3, Cout*TD, TD) band-tiled weight, Cin == 1.

    Entry (t, j) multiplies input depth block (t - 1 + j); slices reaching
    outside [0, D) are zeroed (this is exactly the conv's zero padding).
    """
    w7 = weight[:, 0, :, 0, 0].astype(jnp.float32)               # (Cout, 7)
    Cout = w7.shape[0]
    T = D // TD
    a = jnp.arange(TD)                                           # local d_out
    b = jnp.arange(TD)                                           # local d_in
    j = jnp.arange(3)
    # tap index k = d_in - d_out + 3, with d_in living in block (t - 1 + j)
    k_idx = (j[:, None, None] - 1) * TD + b[None, None, :] - a[None, :, None] + _PAD
    valid = (k_idx >= 0) & (k_idx < _KTAP)
    k_clip = jnp.clip(k_idx, 0, _KTAP - 1)
    band = jnp.where(valid[None], w7[:, k_clip], 0.0)            # (Cout,3,TD,TD)
    band = jnp.transpose(band, (1, 0, 2, 3)).reshape(3, Cout * TD, TD)
    Wt = jnp.broadcast_to(band[None], (T, 3, Cout * TD, TD))
    # Mask the out-of-range neighbour blocks at both ends of the depth axis.
    jmask = jnp.ones((T, 3), jnp.float32)
    jmask = jmask.at[0, 0].set(0.0).at[T - 1, 2].set(0.0)
    return Wt * jmask[:, :, None, None]


def _pick_lane_tile(HW, bytes_per_col):
    """Largest lane tile that is a multiple of 128 dividing HW (or HW itself
    when HW is not 128-aligned) and keeps the double-buffered block bytes
    under the per-step VMEM budget."""
    if HW % 128 != 0:
        return HW            # small / ragged spatial extent: use the full dim
    cap = max(128, _BLOCK_BUDGET_BYTES // max(bytes_per_col, 1))
    best = 128
    t = 128
    while t <= HW:
        if HW % t == 0 and t <= cap:
            best = t
        t += 128
    return best


# --------------------------------- forward ---------------------------------


def spc_forward(x, weight):
    """SPCModule.forward: Conv3d((7,1,1), padding=(3,0,0), bias=False).

    x:      (N, Cin, D, H, W) float32
    weight: (Cout, Cin, 7, 1, 1) float32
    returns (N, Cout, D, H, W) float32
    """
    N, Cin, D, H, W = x.shape
    Cout = weight.shape[0]
    HW = H * W
    x3 = x.reshape(N, Cin * D, HW).astype(jnp.float32)

    # True cost (7-tap conv), not the banded-matmul FLOP count.
    cost = pl.CostEstimate(
        flops=int(2 * N * Cout * Cin * _KTAP * D * HW),
        transcendentals=0,
        bytes_accessed=int(4 * (N * Cin * D * HW + N * Cout * D * HW
                                + Cout * Cin * _KTAP)))

    use_band = (Cin == 1) and (D % 8 == 0) and (D // 8 >= 3)

    if use_band:
        # --- band-tiled path (realistic spectral depths, Cin == 1) ---------
        # Pick TD (multiple of 8 dividing D, >= 3 tiles) so the per-step
        # output block is big enough to amortize per-step overhead while
        # still exploiting the 7-tap band sparsity.
        TL_probe = _pick_lane_tile(HW, 2 * (3 * 8 + Cout * 8) * 4)
        TD = 8
        target_out_block = 512 * 1024
        for cand in range(8, D + 1, 8):
            if D % cand != 0 or D // cand < 3:
                continue
            TD = cand
            if Cout * cand * TL_probe * 4 >= target_out_block:
                break
        T = D // TD
        M_t = Cout * TD
        Wt = _tiled_band_weight(weight, D, TD)           # (T, 3, M_t, TD)
        TL = _pick_lane_tile(HW, 2 * (3 * TD + M_t) * 4)
        n_l = HW // TL

        y = pl.pallas_call(
            _spc_band_kernel,
            out_shape=jax.ShapeDtypeStruct((N, Cout, D, HW), jnp.float32),
            grid=(N, T, n_l),
            in_specs=[
                pl.BlockSpec((None, 3, M_t, TD),
                             lambda n, t, l: (t, 0, 0, 0)),
                pl.BlockSpec((None, TD, TL),
                             lambda n, t, l: (n, jnp.maximum(t - 1, 0), l)),
                pl.BlockSpec((None, TD, TL),
                             lambda n, t, l: (n, t, l)),
                pl.BlockSpec((None, TD, TL),
                             lambda n, t, l: (n, jnp.minimum(t + 1, T - 1), l)),
            ],
            out_specs=pl.BlockSpec((None, Cout, TD, TL),
                                   lambda n, t, l: (n, 0, t, l)),
            compiler_params=pltpu.CompilerParams(
                dimension_semantics=("parallel", "parallel", "parallel"),
                vmem_limit_bytes=_VMEM_LIMIT_BYTES),
            cost_estimate=cost,
        )(Wt, x3, x3, x3)
        return y.reshape(N, Cout, D, H, W)

    # --- dense-band path (general Cin, small D) -----------------------------
    K = Cin * D
    M = Cout * D
    Wb = _dense_band_weight(weight, D)                    # (M, K)
    TL = _pick_lane_tile(HW, 2 * (K + M) * 4)
    # Keep the grid length >= 2 so the DMA pipeline (and v7x's 2 TCs) stay busy.
    if N * (HW // TL) < 2 and TL % 256 == 0:
        TL //= 2
    n_l = HW // TL

    y = pl.pallas_call(
        _spc_dense_kernel,
        out_shape=jax.ShapeDtypeStruct((N, M, HW), jnp.float32),
        grid=(N, n_l),
        in_specs=[
            pl.BlockSpec((None, K, TL), lambda n, l: (n, 0, l)),
            pl.BlockSpec((M, K), lambda n, l: (0, 0)),
        ],
        out_specs=pl.BlockSpec((None, M, TL), lambda n, l: (n, 0, l)),
        compiler_params=pltpu.CompilerParams(
            dimension_semantics=("parallel", "parallel"),
            vmem_limit_bytes=_VMEM_LIMIT_BYTES),
        cost_estimate=cost,
    )(x3, Wb)
    return y.reshape(N, Cout, D, H, W)


# ---------------------------- pure-JAX reference ---------------------------


def spc_reference(x, weight):
    """Literal Conv3d reference (cross-correlation, zero padding, no bias)."""
    return lax.conv_general_dilated(
        x.astype(jnp.float32), weight.astype(jnp.float32),
        window_strides=(1, 1, 1),
        padding=((_PAD, _PAD), (0, 0), (0, 0)),
        dimension_numbers=("NCDHW", "OIDHW", "NCDHW"),
        precision=lax.Precision.HIGHEST)


# ---------------------------------- main -----------------------------------


if __name__ == "__main__":
    key = jax.random.PRNGKey(0)
    k1, k2, k3, k4, k5, k6 = jax.random.split(key, 6)

    # Case 1: SSRN-style usage SPCModule(1, 4) at small shapes (dense path).
    x1 = jax.random.normal(k1, (2, 1, 8, 16, 16), jnp.float32)
    w1 = 0.2 * jax.random.normal(k2, (4, 1, 7, 1, 1), jnp.float32)
    o1 = jax.block_until_ready(spc_forward(x1, w1))
    r1 = jax.block_until_ready(spc_reference(x1, w1))
    assert o1.shape == (2, 4, 8, 16, 16)
    np.testing.assert_allclose(np.asarray(o1), np.asarray(r1),
                               rtol=1e-4, atol=1e-4)

    # Case 2: in_channels > 1 exercises the general banded weight (dense path).
    x2 = jax.random.normal(k3, (2, 2, 8, 16, 16), jnp.float32)
    w2 = 0.2 * jax.random.normal(k4, (3, 2, 7, 1, 1), jnp.float32)
    o2 = jax.block_until_ready(spc_forward(x2, w2))
    r2 = jax.block_until_ready(spc_reference(x2, w2))
    np.testing.assert_allclose(np.asarray(o2), np.asarray(r2),
                               rtol=1e-4, atol=1e-4)

    # Case 3: realistic spectral depth -> band-tiled path.
    x3 = jax.random.normal(k5, (2, 1, 192, 16, 16), jnp.float32)
    w3 = 0.2 * jax.random.normal(k6, (24, 1, 7, 1, 1), jnp.float32)
    o3 = jax.block_until_ready(spc_forward(x3, w3))
    r3 = jax.block_until_ready(spc_reference(x3, w3))
    assert o3.shape == (2, 24, 192, 16, 16)
    np.testing.assert_allclose(np.asarray(o3), np.asarray(r3),
                               rtol=1e-4, atol=1e-4)

    print("KERNEL_OK")
</pallas_src>

<mosaic_0001>
module attributes {stable_mosaic.version = 11 : i64} {
  func.func @_spc_dense_kernel(%arg0: i32, %arg1: i32, %arg2: memref<1x8x256xf32, #tpu.memory_space<vmem>>, %arg3: memref<32x8xf32, #tpu.memory_space<vmem>>, %arg4: memref<1x32x256xf32, #tpu.memory_space<vmem>>) attributes {dimension_semantics = [#tpu.dimension_semantics<parallel>, #tpu.dimension_semantics<parallel>], iteration_bounds = array<i64: 2, 1>, scalar_prefetch = 0 : i64, scratch_operands = 0 : i64, tpu.core_type = #tpu.core_type<tc>, window_params = [{transform_indices = @transform_0, window_bounds = array<i64: 1, 8, 256>}, {pipeline_mode = #tpu.pipeline_mode<synchronous>, transform_indices = @transform_1, window_bounds = array<i64: 32, 8>}, {transform_indices = @transform_2, window_bounds = array<i64: 1, 32, 256>}]} {
    %c0 = arith.constant 0 : index
    %c0_0 = arith.constant 0 : index
    %0 = vector.load %arg3[%c0, %c0_0] : memref<32x8xf32, #tpu.memory_space<vmem>>, vector<32x8xf32>
    %c0_1 = arith.constant 0 : index
    %c0_2 = arith.constant 0 : index
    %c0_3 = arith.constant 0 : index
    %1 = vector.load %arg2[%c0_1, %c0_2, %c0_3] : memref<1x8x256xf32, #tpu.memory_space<vmem>>, vector<1x8x256xf32>
    %2 = vector.shape_cast %1 : vector<1x8x256xf32> to vector<8x256xf32>
    %cst = arith.constant dense<0.000000e+00> : vector<32x256xf32>
    %3 = tpu.matmul %0, %2, %cst {dimension_numbers = #tpu.dot_dimension_numbers<[1], [0], [0], [1], [0, 0, 1, 1], [], []>, precision = #tpu.contract_precision<fp32>} : vector<32x8xf32>, vector<8x256xf32>, vector<32x256xf32> -> vector<32x256xf32>
    %c0_4 = arith.constant 0 : index
    %c0_5 = arith.constant 0 : index
    %c0_6 = arith.constant 0 : index
    %4 = vector.load %arg4[%c0_4, %c0_5, %c0_6] : memref<1x32x256xf32, #tpu.memory_space<vmem>>, vector<1x32x256xf32>
    %5 = vector.shape_cast %4 : vector<1x32x256xf32> to vector<32x256xf32>
    %6 = vector.shape_cast %3 : vector<32x256xf32> to vector<1x32x256xf32>
    tpu.vector_store %arg4[%c0_4, %c0_5, %c0_6], %6 {strides = array<i32>} : memref<1x32x256xf32, #tpu.memory_space<vmem>>, vector<1x32x256xf32>,
    return
  }
  func.func @transform_0(%arg0: i32, %arg1: i32) -> (i32, i32, i32) {
    %c0_i32 = arith.constant 0 : i32
    %c0_i32_0 = arith.constant 0 : i32
    return %arg0, %c0_i32, %arg1 : i32, i32, i32
  }
  func.func @transform_1(%arg0: i32, %arg1: i32) -> (i32, i32) {
    %c0_i32 = arith.constant 0 : i32
    %c0_i32_0 = arith.constant 0 : i32
    %c0_i32_1 = arith.constant 0 : i32
    return %c0_i32, %c0_i32_0 : i32, i32
  }
  func.func @transform_2(%arg0: i32, %arg1: i32) -> (i32, i32, i32) {
    %c0_i32 = arith.constant 0 : i32
    %c0_i32_0 = arith.constant 0 : i32
    return %arg0, %c0_i32, %arg1 : i32, i32, i32
  }
}

</mosaic_0001>

<llo_original>
// kernel: tpu_custom_call.1
$region0: #{tpu_custom_call.1}
  #allocation0 [shape = 'u32[]', space=smem, size = 0x4, offset = 0x4, fixed_abs, tag = 'smem constant byte address 0x4 - core index']
  #allocation1 [shape = 'u32[144,128]{1,0:T(1,128)}', space=vmem, size = 0x12000, scoped, tag = 'internal scratch']
  %s0 = inlined_call_operand.vmem [shape: f32[2,8,256], index: 0, kind: input, shape index: {}]
  %s1 = inlined_call_operand.vmem [shape: f32[32,8], index: 1, kind: input, shape index: {}]
  %s2 = inlined_call_operand.hbm [shape: f32[2,32,256], index: 2, kind: output, shape index: {}]
  %s3 = sld [smem:[#allocation0]]
  $region41: #{tpu_custom_call.1} parent=0
    _
  %s5 = ssub.s32 1, %s3
  %s6 = scalar_select 0, %s5, %s3
  $region1: #{tpu_custom_call.1} parent=0
    #allocation2 [shape = 'u8[65536]{0}', space=vmem, size = 0x10000, scoped, tag = 'output window, operand 0']
    #allocation3 [shape = 's32[2]{0}', space=sflag, size = 0x8, scoped, tag = 'scoped memory for tpu_custom_call.1']
    %7 = vsyncpa [#allocation3], 0
    %s8 = scalar_lea.sflag [#allocation3], 1
    %9 = vsyncpa %s8, 0
    loop: start=0, step=1, limit=4
    $region2: #{tpu_custom_call.1} parent=1 // loop_pre_header
      _
    $region3: #{tpu_custom_call.1} parent=1 // loop_header
      %s11 = sphi 0, %s15
      %p12 = scmp.ge.s32.totalorder %s11, 4
      %s18 = sphi 0, %s30
      %s19 = sphi 0, %s26
      %s20 = sphi 0, %s18
      %s21 = sphi 0, %s19
      %s22 = sphi 0, %s20
      %s23 = sphi 0, %s21
      %s35 = sphi 0, %s37
      %s38 = sphi 0, %s35
      %s39 = sphi 0, %s38
      %s55 = sphi 0, %s39
      %s59 = sphi 0, %s59
      %s61 = sphi 0, %s59
      %s62 = sphi 0, %s61
      %s76 = sphi 0, %s62
      %s84 = sphi 0, %s86
      %s87 = sphi 0, %s84
      %s88 = sphi 0, %s87
      %s104 = sphi 0, %s88
    $region4: #{tpu_custom_call.1} parent=1 // loop_header_branch
      %14 = sbr.rel (%p12) target = $region8
    $region5: #{tpu_custom_call.1} parent=1 // loop_body
      %s16 = ssub.s32 %s11, 1
      %s17 = ssub.s32 %s11, 2
      %s24 = sadd.s32 1, %s19
      %p25 = scmp.ge.s32.totalorder %s24, 1
      %s26 = scalar_select %p25, 0, %s24
      %s27 = sadd.s32 1, %s18
      %s28 = scalar_select %p25, %s27, %s18
      %p29 = scmp.ge.s32.totalorder %s28, 2
      %s30 = scalar_select %p29, 0, %s28
      %s31 = ssub.s32 %s18, %s30
      %s32 = ssub.s32 %s19, %s26
      %s33 = sor.u32 %s31, %s32
      %p34 = scmp.eq.s32.totalorder %s33, 0
      %s36 = sadd.s32 %s35, 1
      %s37 = scalar_select %p34, %s35, %s36
      %p40 = pneg %p34
      %p41 = scmp.eq.s32.totalorder %s11, 1
      %p42 = por %p40, %p41
      %p43 = scmp.ne.s32.totalorder %s35, %s38
      %p44 = scmp.eq.s32.totalorder %s11, 0
      %p45 = por %p43, %p44
      %p46 = scmp.ne.s32.totalorder %s35, %s38
      %p47 = scmp.eq.s32.totalorder %s16, 1
      %p48 = por %p46, %p47
      %p49 = scmp.ne.s32.totalorder %s38, %s39
      %p50 = scmp.eq.s32.totalorder %s16, 0
      %p51 = por %p49, %p50
      %p52 = scmp.ne.s32.totalorder %s38, %s39
      %p53 = scmp.eq.s32.totalorder %s17, 1
      %p54 = por %p52, %p53
      %p56 = scmp.ne.s32.totalorder %s39, %s55
      %p57 = scmp.eq.s32.totalorder %s17, 0
      %p58 = por %p56, %p57
      %s60 = sadd.s32 %s59, 1
      %p63 = scmp.eq.s32.totalorder %s11, 1
      %p64 = scmp.ne.s32.totalorder %s59, %s61
      %p65 = scmp.eq.s32.totalorder %s11, 0
      %p66 = por %p64, %p65
      %p67 = scmp.ne.s32.totalorder %s59, %s61
      %p68 = scmp.eq.s32.totalorder %s16, 1
      %p69 = por %p67, %p68
      %p70 = scmp.ne.s32.totalorder %s61, %s62
      %p71 = scmp.eq.s32.totalorder %s16, 0
      %p72 = por %p70, %p71
      %p73 = scmp.ne.s32.totalorder %s61, %s62
      %p74 = scmp.eq.s32.totalorder %s17, 1
      %p75 = por %p73, %p74
      %p77 = scmp.ne.s32.totalorder %s62, %s76
      %p78 = scmp.eq.s32.totalorder %s17, 0
      %p79 = por %p77, %p78
      %s80 = ssub.s32 %s18, %s30
      %s81 = ssub.s32 %s19, %s26
      %s82 = sor.u32 %s80, %s81
      %p83 = scmp.eq.s32.totalorder %s82, 0
      %s85 = sadd.s32 %s84, 1
      %s86 = scalar_select %p83, %s84, %s85
      %p89 = pneg %p83
      %p90 = scmp.eq.s32.totalorder %s11, 1
      %p91 = por %p89, %p90
      %p92 = scmp.ne.s32.totalorder %s84, %s87
      %p93 = scmp.eq.s32.totalorder %s11, 0
      %p94 = por %p92, %p93
      %p95 = scmp.ne.s32.totalorder %s84, %s87
      %p96 = scmp.eq.s32.totalorder %s16, 1
      %p97 = por %p95, %p96
      %p98 = scmp.ne.s32.totalorder %s87, %s88
      %p99 = scmp.eq.s32.totalorder %s16, 0
      %p100 = por %p98, %p99
      %p101 = scmp.ne.s32.totalorder %s87, %s88
      %p102 = scmp.eq.s32.totalorder %s17, 1
      %p103 = por %p101, %p102
      %p105 = scmp.ne.s32.totalorder %s88, %s104
      %p106 = scmp.eq.s32.totalorder %s17, 0
      %p107 = por %p105, %p106
      %p108 = scmp.le.s32.totalorder 1, %s11
      %p109 = scmp.lt.s32.totalorder %s11, 3
      %p110 = pnand %p108, %p109
      %p111 = pneg %p110
      // Predicated region
      $region9: #{tpu_custom_call.1} parent=5 // pred_check
        _
      $region10: #{tpu_custom_call.1} parent=5 // pred_check_branch
        %113 = sbr.rel (%p110) target = $region12
      $region11: #{tpu_custom_call.1} parent=5 // pred_region
        %s114 = ssub.s32 %s11, 1
        // Predicated region
        $region13: #{tpu_custom_call.1} parent=11 // pred_check
          %p115 = pneg %p72
        $region14: #{tpu_custom_call.1} parent=11 // pred_check_branch
          %117 = sbr.rel (%p115) target = $region16
        $region15: #{tpu_custom_call.1} parent=11 // pred_region
          _
        $region16: #{tpu_custom_call.1} parent=11 // pred_fallthru
          _
      $region12: #{tpu_custom_call.1} parent=5 // pred_fallthru
        _
      %p118 = scmp.lt.s32.totalorder %s11, 2
      // Predicated region
      $region17: #{tpu_custom_call.1} parent=5 // pred_check
        %p119 = pneg %p118
      $region18: #{tpu_custom_call.1} parent=5 // pred_check_branch
        %121 = sbr.rel (%p119) target = $region20
      $region19: #{tpu_custom_call.1} parent=5 // pred_region
        // Predicated region
        $region21: #{tpu_custom_call.1} parent=19 // pred_check
          %p122 = pneg %p45
        $region22: #{tpu_custom_call.1} parent=19 // pred_check_branch
          %124 = sbr.rel (%p122) target = $region24
        $region23: #{tpu_custom_call.1} parent=19 // pred_region
          %s125 = smul.u32 2, %s19
          %p126 = scmp.lt.s32.totalorder %s18, 1
          %s127 = scalar_select %p126, %s18, 1
          %p128 = scmp.lt.s32.totalorder %s125, 1
          %s129 = scalar_select %p128, %s125, 1
          %s130 = smul.addr %s127, 2
          %s131 = sadd.s32 %s129, %s130
          %s132 = smul.addr %s131, 8
          %s133 = scalar_lea.vmem %s0, %s132
          %s134 = smul.u32 2, %s19
        $region24: #{tpu_custom_call.1} parent=19 // pred_fallthru
          _
      $region20: #{tpu_custom_call.1} parent=5 // pred_fallthru
        _
      %p135 = scmp.le.s32.totalorder 1, %s11
      %p136 = scmp.lt.s32.totalorder %s11, 3
      %p137 = pnand %p135, %p136
      %p138 = pneg %p137
      // Predicated region
      $region25: #{tpu_custom_call.1} parent=5 // pred_check
        _
      $region26: #{tpu_custom_call.1} parent=5 // pred_check_branch
        %140 = sbr.rel (%p137) target = $region28
      $region27: #{tpu_custom_call.1} parent=5 // pred_region
        %s141 = ssub.s32 %s11, 1
        %s142 = smul.u32 2, %s21
        %p143 = scmp.lt.s32.totalorder %s20, 1
        %s144 = scalar_select %p143, %s20, 1
        %p145 = scmp.lt.s32.totalorder %s142, 1
        %s146 = scalar_select %p145, %s142, 1
        %s147 = smul.addr %s144, 2
        %s148 = sadd.s32 %s146, %s147
        %s149 = smul.addr %s148, 8
        %s150 = scalar_lea.vmem %s0, %s149
        %p151 = pneg %p51
        %p152 = pneg %p48
        %p153 = pneg %p72
        %p154 = pneg %p69
        %p155 = pneg %p100
        %p156 = pneg %p97
        %s157 = sand.u32 %s87, 1
        %s158 = scalar_lea.sflag [#allocation3], %s157
        %s159 = sand.u32 %s87, 1
        %s160 = smul.addr %s159, 64
        %s161 = scalar_lea.vmem [#allocation2], %s160
        %s162 = smul.u32 2, %s21
        %p163 = scmp.lt.s32.totalorder %s20, 1
        %s164 = scalar_select %p163, %s20, 1
        %p165 = scmp.lt.s32.totalorder %s162, 1
        %s166 = scalar_select %p165, %s162, 1
        %s167 = smul.addr %s164, 2
        %s168 = sadd.s32 %s166, %s167
        %s169 = smul.addr %s168, 8
        %s170 = scalar_lea.vmem %s0, %s169
        %s171 = smul.u32 2, %s21
        %s172 = smul.u32 2, %s21
        %v173 = vld [vmem:[%s1] sm:$0xff]
        %v174 = vld [vmem:[%s1 + $0x8] sm:$0xff]
        %v175 = vld [vmem:[%s1 + $0x10] sm:$0xff]
        %v176 = vld [vmem:[%s1 + $0x18] sm:$0xff]
        %v177 = vld [vmem:[%s170] sm:$0xff]
        %v178 = vld [vmem:[%s170 + $0x8] sm:$0xff]
        %vm179 = vcmask 64512
        %v181 = vsel %vm179, %v173, 0
        %v184 = vsel %vm179, %v174, 0
        %v187 = vsel %vm179, %v175, 0
        %v190 = vsel %vm179, %v176, 0
        %v192 = vand.u32 %v178, 4294901760
        %193 = vmatprep.subr.mxu0 %v192
        %v194 = vand.u32 %v177, 4294901760
        %195 = vmatpush1.msra.mxu0 %v194
        %196 = vmatprep.subr.mxu0 0.0
        %197 = vmatpush1.msra.mxu0 0.0
        %198 = vmatprep.subr.mxu0 0.0
        %199 = vmatpush1.msra.mxu0 0.0
        %200 = vmatprep.subr.mxu0 0.0
        %201 = vmatpush1.msra.mxu0 0.0
        %202 = vmatprep.subr.mxu0 0.0
        %203 = vmatpush1.msra.mxu0 0.0
        %204 = vmatprep.subr.mxu0 0.0
        %205 = vmatpush1.msra.mxu0 0.0
        %206 = vmatprep.subr.mxu0 0.0
        %207 = vmatpush1.msra.mxu0 0.0
        %208 = vmatprep.subr.mxu0 0.0
        %209 = vmatpush1.msra.mxu0 0.0
        %210 = vmatprep.subr.mxu0 0.0
        %211 = vmatpush1.msra.mxu0 0.0
        %212 = vmatprep.subr.mxu0 0.0
        %213 = vmatpush1.msra.mxu0 0.0
        %214 = vmatprep.subr.mxu0 0.0
        %215 = vmatpush1.msra.mxu0 0.0
        %216 = vmatprep.subr.mxu0 0.0
        %217 = vmatpush1.msra.mxu0 0.0
        %218 = vmatprep.subr.mxu0 0.0
        %219 = vmatpush1.msra.mxu0 0.0
        %220 = vmatprep.subr.mxu0 0.0
        %221 = vmatpush1.msra.mxu0 0.0
        %222 = vmatprep.subr.mxu0 0.0
        %223 = vmatpush1.msra.mxu0 0.0
        %224 = vmatprep.subr.mxu0 0.0
        %225 = vmatpush1.msra.mxu0 0.0
        %226 = vmatprep.subr.mxu0 0.0
        %227 = vmatpush1.msra.mxu0 0.0
        %228 = vmatprep.subr.mxu0 0.0
        %229 = vmatpush1.msra.mxu0 0.0
        %230 = vmatprep.subr.mxu0 0.0
        %231 = vmatpush1.msra.mxu0 0.0
        %232 = vmatprep.subr.mxu0 0.0
        %233 = vmatpush1.msra.mxu0 0.0
        %234 = vmatprep.subr.mxu0 0.0
        %235 = vmatpush1.msra.mxu0 0.0
        %236 = vmatprep.subr.mxu0 0.0
        %237 = vmatpush1.msra.mxu0 0.0
        %238 = vmatprep.subr.mxu0 0.0
        %239 = vmatpush1.msra.mxu0 0.0
        %240 = vmatprep.subr.mxu0 0.0
        %241 = vmatpush1.msra.mxu0 0.0
        %242 = vmatprep.subr.mxu0 0.0
        %243 = vmatpush1.msra.mxu0 0.0
        %244 = vmatprep.subr.mxu0 0.0
        %245 = vmatpush1.msra.mxu0 0.0
        %246 = vmatprep.subr.mxu0 0.0
        %247 = vmatpush1.msra.mxu0 0.0
        %248 = vmatprep.subr.mxu0 0.0
        %249 = vmatpush1.msra.mxu0 0.0
        %250 = vmatprep.subr.mxu0 0.0
        %251 = vmatpush1.msra.mxu0 0.0
        %252 = vmatprep.subr.mxu0 0.0
        %253 = vmatpush1.msra.mxu0 0.0
        %254 = vmatprep.subr.mxu0 0.0
        %255 = vmatpush1.msra.mxu0 0.0
        %256 = vmatprep.subr.mxu0 0.0
        %257 = vmatpush1.msra.mxu0 0.0
        %258 = vmatprep.mubr.f32.mxu0 0.0
        %v259 = vand.u32 %v181, 4294901760
        %v260 = vsub.f32 %v181, %v259
        %v261 = vand.u32 %v260, 4294901760
        %v262 = vsub.f32 %v260, %v261
        %v263 = vand.u32 %v262, 4294901760
        %264 = vmatmul.mubr.f32.gmra.mrb[0].mxu0 %v263
        %v265 = vpop.f32.mrb[0].mxu0
        %v266 = vadd.f32 0.0, %v265
        %v267 = vpop.f32.mrb[0].mxu0
        %v268 = vadd.f32 0.0, %v267
        %269 = vmatprep.mubr.f32.mxu0 0.0
        %v270 = vand.u32 %v184, 4294901760
        %v271 = vsub.f32 %v184, %v270
        %v272 = vand.u32 %v271, 4294901760
        %v273 = vsub.f32 %v271, %v272
        %v274 = vand.u32 %v273, 4294901760
        %275 = vmatmul.mubr.f32.gmra.mrb[0].mxu0 %v274
        %v276 = vpop.f32.mrb[0].mxu0
        %v277 = vadd.f32 0.0, %v276
        %v278 = vpop.f32.mrb[0].mxu0
        %v279 = vadd.f32 0.0, %v278
        %280 = vmatprep.mubr.f32.mxu0 0.0
        %v281 = vand.u32 %v187, 4294901760
        %v282 = vsub.f32 %v187, %v281
        %v283 = vand.u32 %v282, 4294901760
        %v284 = vsub.f32 %v282, %v283
        %v285 = vand.u32 %v284, 4294901760
        %286 = vmatmul.mubr.f32.gmra.mrb[0].mxu0 %v285
        %v287 = vpop.f32.mrb[0].mxu0
        %v288 = vadd.f32 0.0, %v287
        %v289 = vpop.f32.mrb[0].mxu0
        %v290 = vadd.f32 0.0, %v289
        %291 = vmatprep.mubr.f32.mxu0 0.0
        %v292 = vand.u32 %v190, 4294901760
        %v293 = vsub.f32 %v190, %v292
        %v294 = vand.u32 %v293, 4294901760
        %v295 = vsub.f32 %v293, %v294
        %v296 = vand.u32 %v295, 4294901760
        %297 = vmatmul.mubr.f32.gmra.mrb[0].mxu0 %v296
        %v298 = vpop.f32.mrb[0].mxu0
        %v299 = vadd.f32 0.0, %v298
        %v300 = vpop.f32.mrb[0].mxu0
        %v301 = vadd.f32 0.0, %v300
        %302 = vdwg.mxu0
        %v303 = vand.u32 %v178, 4294901760
        %v304 = vsub.f32 %v178, %v303
        %v305 = vand.u32 %v304, 4294901760
        %v306 = vsub.f32 %v304, %v305
        %v307 = vand.u32 %v306, 4294901760
        %308 = vmatprep.subr.mxu0 %v307
        %v309 = vand.u32 %v177, 4294901760
        %v310 = vsub.f32 %v177, %v309
        %v311 = vand.u32 %v310, 4294901760
        %v312 = vsub.f32 %v310, %v311
        %v313 = vand.u32 %v312, 4294901760
        %314 = vmatpush1.msra.mxu0 %v313
        %315 = vmatprep.subr.mxu0 0.0
        %316 = vmatpush1.msra.mxu0 0.0
        %317 = vmatprep.subr.mxu0 0.0
        %318 = vmatpush1.msra.mxu0 0.0
        %319 = vmatprep.subr.mxu0 0.0
        %320 = vmatpush1.msra.mxu0 0.0
        %321 = vmatprep.subr.mxu0 0.0
        %322 = vmatpush1.msra.mxu0 0.0
        %323 = vmatprep.subr.mxu0 0.0
        %324 = vmatpush1.msra.mxu0 0.0
        %325 = vmatprep.subr.mxu0 0.0
        %326 = vmatpush1.msra.mxu0 0.0
        %327 = vmatprep.subr.mxu0 0.0
        %328 = vmatpush1.msra.mxu0 0.0
        %329 = vmatprep.subr.mxu0 0.0
        %330 = vmatpush1.msra.mxu0 0.0
        %331 = vmatprep.subr.mxu0 0.0
        %332 = vmatpush1.msra.mxu0 0.0
        %333 = vmatprep.subr.mxu0 0.0
        %334 = vmatpush1.msra.mxu0 0.0
        %335 = vmatprep.subr.mxu0 0.0
        %336 = vmatpush1.msra.mxu0 0.0
        %337 = vmatprep.subr.mxu0 0.0
        %338 = vmatpush1.msra.mxu0 0.0
        %339 = vmatprep.subr.mxu0 0.0
        %340 = vmatpush1.msra.mxu0 0.0
        %341 = vmatprep.subr.mxu0 0.0
        %342 = vmatpush1.msra.mxu0 0.0
        %343 = vmatprep.subr.mxu0 0.0
        %344 = vmatpush1.msra.mxu0 0.0
        %345 = vmatprep.subr.mxu0 0.0
        %346 = vmatpush1.msra.mxu0 0.0
        %347 = vmatprep.subr.mxu0 0.0
        %348 = vmatpush1.msra.mxu0 0.0
        %349 = vmatprep.subr.mxu0 0.0
        %350 = vmatpush1.msra.mxu0 0.0
        %351 = vmatprep.subr.mxu0 0.0
        %352 = vmatpush1.msra.mxu0 0.0
        %353 = vmatprep.subr.mxu0 0.0
        %354 = vmatpush1.msra.mxu0 0.0
        %355 = vmatprep.subr.mxu0 0.0
        %356 = vmatpush1.msra.mxu0 0.0
        %357 = vmatprep.subr.mxu0 0.0
        %358 = vmatpush1.msra.mxu0 0.0
        %359 = vmatprep.subr.mxu0 0.0
        %360 = vmatpush1.msra.mxu0 0.0
        %361 = vmatprep.subr.mxu0 0.0
        %362 = vmatpush1.msra.mxu0 0.0
        %363 = vmatprep.subr.mxu0 0.0
        %364 = vmatpush1.msra.mxu0 0.0
        %365 = vmatprep.subr.mxu0 0.0
        %366 = vmatpush1.msra.mxu0 0.0
        %367 = vmatprep.subr.mxu0 0.0
        %368 = vmatpush1.msra.mxu0 0.0
        %369 = vmatprep.subr.mxu0 0.0
        %370 = vmatpush1.msra.mxu0 0.0
        %371 = vmatprep.subr.mxu0 0.0
        %372 = vmatpush1.msra.mxu0 0.0
        %373 = vmatprep.subr.mxu0 0.0
        %374 = vmatpush1.msra.mxu0 0.0
        %375 = vmatprep.subr.mxu0 0.0
        %376 = vmatpush1.msra.mxu0 0.0
        %377 = vmatprep.mubr.f32.mxu0 0.0
        %v378 = vand.u32 %v181, 4294901760
        %379 = vmatmul.mubr.f32.gmra.mrb[0].mxu0 %v378
        %v380 = vpop.f32.mrb[0].mxu0
        %v381 = vadd.f32 %v266, %v380
        %v382 = vpop.f32.mrb[0].mxu0
        %v383 = vadd.f32 %v268, %v382
        %384 = vmatprep.mubr.f32.mxu0 0.0
        %v385 = vand.u32 %v184, 4294901760
        %386 = vmatmul.mubr.f32.gmra.mrb[0].mxu0 %v385
        %v387 = vpop.f32.mrb[0].mxu0
        %v388 = vadd.f32 %v277, %v387
        %v389 = vpop.f32.mrb[0].mxu0
        %v390 = vadd.f32 %v279, %v389
        %391 = vmatprep.mubr.f32.mxu0 0.0
        %v392 = vand.u32 %v187, 4294901760
        %393 = vmatmul.mubr.f32.gmra.mrb[0].mxu0 %v392
        %v394 = vpop.f32.mrb[0].mxu0
        %v395 = vadd.f32 %v288, %v394
        %v396 = vpop.f32.mrb[0].mxu0
        %v397 = vadd.f32 %v290, %v396
        %398 = vmatprep.mubr.f32.mxu0 0.0
        %v399 = vand.u32 %v190, 4294901760
        %400 = vmatmul.mubr.f32.gmra.mrb[0].mxu0 %v399
        %v401 = vpop.f32.mrb[0].mxu0
        %v402 = vadd.f32 %v299, %v401
        %v403 = vpop.f32.mrb[0].mxu0
        %v404 = vadd.f32 %v301, %v403
        %405 = vdwg.mxu0
        %v406 = vand.u32 %v178, 4294901760
        %v407 = vsub.f32 %v178, %v406
        %408 = vmatprep.subr.mxu0 %v407
        %v409 = vand.u32 %v177, 4294901760
        %v410 = vsub.f32 %v177, %v409
        %411 = vmatpush1.msra.mxu0 %v410
        %412 = vmatprep.subr.mxu0 0.0
        %413 = vmatpush1.msra.mxu0 0.0
        %414 = vmatprep.subr.mxu0 0.0
        %415 = vmatpush1.msra.mxu0 0.0
        %416 = vmatprep.subr.mxu0 0.0
        %417 = vmatpush1.msra.mxu0 0.0
        %418 = vmatprep.subr.mxu0 0.0
        %419 = vmatpush1.msra.mxu0 0.0
        %420 = vmatprep.subr.mxu0 0.0
        %421 = vmatpush1.msra.mxu0 0.0
        %422 = vmatprep.subr.mxu0 0.0
        %423 = vmatpush1.msra.mxu0 0.0
        %424 = vmatprep.subr.mxu0 0.0
        %425 = vmatpush1.msra.mxu0 0.0
        %426 = vmatprep.subr.mxu0 0.0
        %427 = vmatpush1.msra.mxu0 0.0
        %428 = vmatprep.subr.mxu0 0.0
        %429 = vmatpush1.msra.mxu0 0.0
        %430 = vmatprep.subr.mxu0 0.0
        %431 = vmatpush1.msra.mxu0 0.0
        %432 = vmatprep.subr.mxu0 0.0
        %433 = vmatpush1.msra.mxu0 0.0
        %434 = vmatprep.subr.mxu0 0.0
        %435 = vmatpush1.msra.mxu0 0.0
        %436 = vmatprep.subr.mxu0 0.0
        %437 = vmatpush1.msra.mxu0 0.0
        %438 = vmatprep.subr.mxu0 0.0
        %439 = vmatpush1.msra.mxu0 0.0
        %440 = vmatprep.subr.mxu0 0.0
        %441 = vmatpush1.msra.mxu0 0.0
        %442 = vmatprep.subr.mxu0 0.0
        %443 = vmatpush1.msra.mxu0 0.0
        %444 = vmatprep.subr.mxu0 0.0
        %445 = vmatpush1.msra.mxu0 0.0
        %446 = vmatprep.subr.mxu0 0.0
        %447 = vmatpush1.msra.mxu0 0.0
        %448 = vmatprep.subr.mxu0 0.0
        %449 = vmatpush1.msra.mxu0 0.0
        %450 = vmatprep.subr.mxu0 0.0
        %451 = vmatpush1.msra.mxu0 0.0
        %452 = vmatprep.subr.mxu0 0.0
        %453 = vmatpush1.msra.mxu0 0.0
        %454 = vmatprep.subr.mxu0 0.0
        %455 = vmatpush1.msra.mxu0 0.0
        %456 = vmatprep.subr.mxu0 0.0
        %457 = vmatpush1.msra.mxu0 0.0
        %458 = vmatprep.subr.mxu0 0.0
        %459 = vmatpush1.msra.mxu0 0.0
        %460 = vmatprep.subr.mxu0 0.0
        %461 = vmatpush1.msra.mxu0 0.0
        %462 = vmatprep.subr.mxu0 0.0
        %463 = vmatpush1.msra.mxu0 0.0
        %464 = vmatprep.subr.mxu0 0.0
        %465 = vmatpush1.msra.mxu0 0.0
        %466 = vmatprep.subr.mxu0 0.0
        %467 = vmatpush1.msra.mxu0 0.0
        %468 = vmatprep.subr.mxu0 0.0
        %469 = vmatpush1.msra.mxu0 0.0
        %470 = vmatprep.subr.mxu0 0.0
        %471 = vmatpush1.msra.mxu0 0.0
        %472 = vmatprep.subr.mxu0 0.0
        %473 = vmatpush1.msra.mxu0 0.0
        %474 = vmatprep.mubr.f32.mxu0 0.0
        %v475 = vand.u32 %v181, 4294901760
        %v476 = vsub.f32 %v181, %v475
        %477 = vmatmul.mubr.f32.gmra.mrb[0].mxu0 %v476
        %v478 = vpop.f32.mrb[0].mxu0
        %v479 = vadd.f32 %v381, %v478
        %v480 = vpop.f32.mrb[0].mxu0
        %v481 = vadd.f32 %v383, %v480
        %482 = vmatprep.mubr.f32.mxu0 0.0
        %v483 = vand.u32 %v184, 4294901760
        %v484 = vsub.f32 %v184, %v483
        %485 = vmatmul.mubr.f32.gmra.mrb[0].mxu0 %v484
        %v486 = vpop.f32.mrb[0].mxu0
        %v487 = vadd.f32 %v388, %v486
        %v488 = vpop.f32.mrb[0].mxu0
        %v489 = vadd.f32 %v390, %v488
        %490 = vmatprep.mubr.f32.mxu0 0.0
        %v491 = vand.u32 %v187, 4294901760
        %v492 = vsub.f32 %v187, %v491
        %493 = vmatmul.mubr.f32.gmra.mrb[0].mxu0 %v492
        %v494 = vpop.f32.mrb[0].mxu0
        %v495 = vadd.f32 %v395, %v494
        %v496 = vpop.f32.mrb[0].mxu0
        %v497 = vadd.f32 %v397, %v496
        %498 = vmatprep.mubr.f32.mxu0 0.0
        %v499 = vand.u32 %v190, 4294901760
        %v500 = vsub.f32 %v190, %v499
        %501 = vmatmul.mubr.f32.gmra.mrb[0].mxu0 %v500
        %v502 = vpop.f32.mrb[0].mxu0
        %v503 = vadd.f32 %v402, %v502
        %v504 = vpop.f32.mrb[0].mxu0
        %v505 = vadd.f32 %v404, %v504
        %506 = vdwg.mxu0
        %v507 = vand.u32 %v178, 4294901760
        %508 = vmatprep.subr.mxu0 %v507
        %v509 = vand.u32 %v177, 4294901760
        %510 = vmatpush1.msra.mxu0 %v509
        %511 = vmatprep.subr.mxu0 0.0
        %512 = vmatpush1.msra.mxu0 0.0
        %513 = vmatprep.subr.mxu0 0.0
        %514 = vmatpush1.msra.mxu0 0.0
        %515 = vmatprep.subr.mxu0 0.0
        %516 = vmatpush1.msra.mxu0 0.0
        %517 = vmatprep.subr.mxu0 0.0
        %518 = vmatpush1.msra.mxu0 0.0
        %519 = vmatprep.subr.mxu0 0.0
        %520 = vmatpush1.msra.mxu0 0.0
        %521 = vmatprep.subr.mxu0 0.0
        %522 = vmatpush1.msra.mxu0 0.0
        %523 = vmatprep.subr.mxu0 0.0
        %524 = vmatpush1.msra.mxu0 0.0
        %525 = vmatprep.subr.mxu0 0.0
        %526 = vmatpush1.msra.mxu0 0.0
        %527 = vmatprep.subr.mxu0 0.0
        %528 = vmatpush1.msra.mxu0 0.0
        %529 = vmatprep.subr.mxu0 0.0
        %530 = vmatpush1.msra.mxu0 0.0
        %531 = vmatprep.subr.mxu0 0.0
        %532 = vmatpush1.msra.mxu0 0.0
        %533 = vmatprep.subr.mxu0 0.0
        %534 = vmatpush1.msra.mxu0 0.0
        %535 = vmatprep.subr.mxu0 0.0
        %536 = vmatpush1.msra.mxu0 0.0
        %537 = vmatprep.subr.mxu0 0.0
        %538 = vmatpush1.msra.mxu0 0.0
        %539 = vmatprep.subr.mxu0 0.0
        %540 = vmatpush1.msra.mxu0 0.0
        %541 = vmatprep.subr.mxu0 0.0
        %542 = vmatpush1.msra.mxu0 0.0
        %543 = vmatprep.subr.mxu0 0.0
        %544 = vmatpush1.msra.mxu0 0.0
        %545 = vmatprep.subr.mxu0 0.0
        %546 = vmatpush1.msra.mxu0 0.0
        %547 = vmatprep.subr.mxu0 0.0
        %548 = vmatpush1.msra.mxu0 0.0
        %549 = vmatprep.subr.mxu0 0.0
        %550 = vmatpush1.msra.mxu0 0.0
        %551 = vmatprep.subr.mxu0 0.0
        %552 = vmatpush1.msra.mxu0 0.0
        %553 = vmatprep.subr.mxu0 0.0
        %554 = vmatpush1.msra.mxu0 0.0
        %555 = vmatprep.subr.mxu0 0.0
        %556 = vmatpush1.msra.mxu0 0.0
        %557 = vmatprep.subr.mxu0 0.0
        %558 = vmatpush1.msra.mxu0 0.0
        %559 = vmatprep.subr.mxu0 0.0
        %560 = vmatpush1.msra.mxu0 0.0
        %561 = vmatprep.subr.mxu0 0.0
        %562 = vmatpush1.msra.mxu0 0.0
        %563 = vmatprep.subr.mxu0 0.0
        %564 = vmatpush1.msra.mxu0 0.0
        %565 = vmatprep.subr.mxu0 0.0
        %566 = vmatpush1.msra.mxu0 0.0
        %567 = vmatprep.subr.mxu0 0.0
        %568 = vmatpush1.msra.mxu0 0.0
        %569 = vmatprep.subr.mxu0 0.0
        %570 = vmatpush1.msra.mxu0 0.0
        %571 = vmatprep.subr.mxu0 0.0
        %572 = vmatpush1.msra.mxu0 0.0
        %573 = vmatprep.mubr.f32.mxu0 0.0
        %v574 = vand.u32 %v181, 4294901760
        %v575 = vsub.f32 %v181, %v574
        %v576 = vand.u32 %v575, 4294901760
        %577 = vmatmul.mubr.f32.gmra.mrb[0].mxu0 %v576
        %v578 = vpop.f32.mrb[0].mxu0
        %v579 = vadd.f32 %v479, %v578
        %v580 = vpop.f32.mrb[0].mxu0
        %v581 = vadd.f32 %v481, %v580
        %582 = vmatprep.mubr.f32.mxu0 0.0
        %v583 = vand.u32 %v184, 4294901760
        %v584 = vsub.f32 %v184, %v583
        %v585 = vand.u32 %v584, 4294901760
        %586 = vmatmul.mubr.f32.gmra.mrb[0].mxu0 %v585
        %v587 = vpop.f32.mrb[0].mxu0
        %v588 = vadd.f32 %v487, %v587
        %v589 = vpop.f32.mrb[0].mxu0
        %v590 = vadd.f32 %v489, %v589
        %591 = vmatprep.mubr.f32.mxu0 0.0
        %v592 = vand.u32 %v187, 4294901760
        %v593 = vsub.f32 %v187, %v592
        %v594 = vand.u32 %v593, 4294901760
        %595 = vmatmul.mubr.f32.gmra.mrb[0].mxu0 %v594
        %v596 = vpop.f32.mrb[0].mxu0
        %v597 = vadd.f32 %v495, %v596
        %v598 = vpop.f32.mrb[0].mxu0
        %v599 = vadd.f32 %v497, %v598
        %600 = vmatprep.mubr.f32.mxu0 0.0
        %v601 = vand.u32 %v190, 4294901760
        %v602 = vsub.f32 %v190, %v601
        %v603 = vand.u32 %v602, 4294901760
        %604 = vmatmul.mubr.f32.gmra.mrb[0].mxu0 %v603
        %v605 = vpop.f32.mrb[0].mxu0
        %v606 = vadd.f32 %v503, %v605
        %v607 = vpop.f32.mrb[0].mxu0
        %v608 = vadd.f32 %v505, %v607
        %609 = vdwg.mxu0
        %v610 = vand.u32 %v178, 4294901760
        %v611 = vsub.f32 %v178, %v610
        %v612 = vand.u32 %v611, 4294901760
        %613 = vmatprep.subr.mxu0 %v612
        %v614 = vand.u32 %v177, 4294901760
        %v615 = vsub.f32 %v177, %v614
        %v616 = vand.u32 %v615, 4294901760
        %617 = vmatpush1.msra.mxu0 %v616
        %618 = vmatprep.subr.mxu0 0.0
        %619 = vmatpush1.msra.mxu0 0.0
        %620 = vmatprep.subr.mxu0 0.0
        %621 = vmatpush1.msra.mxu0 0.0
        %622 = vmatprep.subr.mxu0 0.0
        %623 = vmatpush1.msra.mxu0 0.0
        %624 = vmatprep.subr.mxu0 0.0
        %625 = vmatpush1.msra.mxu0 0.0
        %626 = vmatprep.subr.mxu0 0.0
        %627 = vmatpush1.msra.mxu0 0.0
        %628 = vmatprep.subr.mxu0 0.0
        %629 = vmatpush1.msra.mxu0 0.0
        %630 = vmatprep.subr.mxu0 0.0
        %631 = vmatpush1.msra.mxu0 0.0
        %632 = vmatprep.subr.mxu0 0.0
        %633 = vmatpush1.msra.mxu0 0.0
        %634 = vmatprep.subr.mxu0 0.0
        %635 = vmatpush1.msra.mxu0 0.0
        %636 = vmatprep.subr.mxu0 0.0
        %637 = vmatpush1.msra.mxu0 0.0
        %638 = vmatprep.subr.mxu0 0.0
        %639 = vmatpush1.msra.mxu0 0.0
        %640 = vmatprep.subr.mxu0 0.0
        %641 = vmatpush1.msra.mxu0 0.0
        %642 = vmatprep.subr.mxu0 0.0
        %643 = vmatpush1.msra.mxu0 0.0
        %644 = vmatprep.subr.mxu0 0.0
        %645 = vmatpush1.msra.mxu0 0.0
        %646 = vmatprep.subr.mxu0 0.0
        %647 = vmatpush1.msra.mxu0 0.0
        %648 = vmatprep.subr.mxu0 0.0
        %649 = vmatpush1.msra.mxu0 0.0
        %650 = vmatprep.subr.mxu0 0.0
        %651 = vmatpush1.msra.mxu0 0.0
        %652 = vmatprep.subr.mxu0 0.0
        %653 = vmatpush1.msra.mxu0 0.0
        %654 = vmatprep.subr.mxu0 0.0
        %655 = vmatpush1.msra.mxu0 0.0
        %656 = vmatprep.subr.mxu0 0.0
        %657 = vmatpush1.msra.mxu0 0.0
        %658 = vmatprep.subr.mxu0 0.0
        %659 = vmatpush1.msra.mxu0 0.0
        %660 = vmatprep.subr.mxu0 0.0
        %661 = vmatpush1.msra.mxu0 0.0
        %662 = vmatprep.subr.mxu0 0.0
        %663 = vmatpush1.msra.mxu0 0.0
        %664 = vmatprep.subr.mxu0 0.0
        %665 = vmatpush1.msra.mxu0 0.0
        %666 = vmatprep.subr.mxu0 0.0
        %667 = vmatpush1.msra.mxu0 0.0
        %668 = vmatprep.subr.mxu0 0.0
        %669 = vmatpush1.msra.mxu0 0.0
        %670 = vmatprep.subr.mxu0 0.0
        %671 = vmatpush1.msra.mxu0 0.0
        %672 = vmatprep.subr.mxu0 0.0
        %673 = vmatpush1.msra.mxu0 0.0
        %674 = vmatprep.subr.mxu0 0.0
        %675 = vmatpush1.msra.mxu0 0.0
        %676 = vmatprep.subr.mxu0 0.0
        %677 = vmatpush1.msra.mxu0 0.0
        %678 = vmatprep.subr.mxu0 0.0
        %679 = vmatpush1.msra.mxu0 0.0
        %680 = vmatprep.mubr.f32.mxu0 0.0
        %v681 = vand.u32 %v181, 4294901760
        %682 = vmatmul.mubr.f32.gmra.mrb[0].mxu0 %v681
        %v683 = vpop.f32.mrb[0].mxu0
        %v684 = vadd.f32 %v579, %v683
        %v685 = vpop.f32.mrb[0].mxu0
        %v686 = vadd.f32 %v581, %v685
        %687 = vmatprep.mubr.f32.mxu0 0.0
        %v688 = vand.u32 %v184, 4294901760
        %689 = vmatmul.mubr.f32.gmra.mrb[0].mxu0 %v688
        %v690 = vpop.f32.mrb[0].mxu0
        %v691 = vadd.f32 %v588, %v690
        %v692 = vpop.f32.mrb[0].mxu0
        %v693 = vadd.f32 %v590, %v692
        %694 = vmatprep.mubr.f32.mxu0 0.0
        %v695 = vand.u32 %v187, 4294901760
        %696 = vmatmul.mubr.f32.gmra.mrb[0].mxu0 %v695
        %v697 = vpop.f32.mrb[0].mxu0
        %v698 = vadd.f32 %v597, %v697
        %v699 = vpop.f32.mrb[0].mxu0
        %v700 = vadd.f32 %v599, %v699
        %701 = vmatprep.mubr.f32.mxu0 0.0
        %v702 = vand.u32 %v190, 4294901760
        %703 = vmatmul.mubr.f32.gmra.mrb[0].mxu0 %v702
        %v704 = vpop.f32.mrb[0].mxu0
        %v705 = vadd.f32 %v606, %v704
        %v706 = vpop.f32.mrb[0].mxu0
        %v707 = vadd.f32 %v608, %v706
        %708 = vdwg.mxu0
        %v709 = vand.u32 %v178, 4294901760
        %710 = vmatprep.subr.mxu0 %v709
        %v711 = vand.u32 %v177, 4294901760
        %712 = vmatpush1.msra.mxu0 %v711
        %713 = vmatprep.subr.mxu0 0.0
        %714 = vmatpush1.msra.mxu0 0.0
        %715 = vmatprep.subr.mxu0 0.0
        %716 = vmatpush1.msra.mxu0 0.0
        %717 = vmatprep.subr.mxu0 0.0
        %718 = vmatpush1.msra.mxu0 0.0
        %719 = vmatprep.subr.mxu0 0.0
        %720 = vmatpush1.msra.mxu0 0.0
        %721 = vmatprep.subr.mxu0 0.0
        %722 = vmatpush1.msra.mxu0 0.0
        %723 = vmatprep.subr.mxu0 0.0
        %724 = vmatpush1.msra.mxu0 0.0
        %725 = vmatprep.subr.mxu0 0.0
        %726 = vmatpush1.msra.mxu0 0.0
        %727 = vmatprep.subr.mxu0 0.0
        %728 = vmatpush1.msra.mxu0 0.0
        %729 = vmatprep.subr.mxu0 0.0
        %730 = vmatpush1.msra.mxu0 0.0
        %731 = vmatprep.subr.mxu0 0.0
        %732 = vmatpush1.msra.mxu0 0.0
        %733 = vmatprep.subr.mxu0 0.0
        %734 = vmatpush1.msra.mxu0 0.0
        %735 = vmatprep.subr.mxu0 0.0
        %736 = vmatpush1.msra.mxu0 0.0
        %737 = vmatprep.subr.mxu0 0.0
        %738 = vmatpush1.msra.mxu0 0.0
        %739 = vmatprep.subr.mxu0 0.0
        %740 = vmatpush1.msra.mxu0 0.0
        %741 = vmatprep.subr.mxu0 0.0
        %742 = vmatpush1.msra.mxu0 0.0
        %743 = vmatprep.subr.mxu0 0.0
        %744 = vmatpush1.msra.mxu0 0.0
        %745 = vmatprep.subr.mxu0 0.0
        %746 = vmatpush1.msra.mxu0 0.0
        %747 = vmatprep.subr.mxu0 0.0
        %748 = vmatpush1.msra.mxu0 0.0
        %749 = vmatprep.subr.mxu0 0.0
        %750 = vmatpush1.msra.mxu0 0.0
        %751 = vmatprep.subr.mxu0 0.0
        %752 = vmatpush1.msra.mxu0 0.0
        %753 = vmatprep.subr.mxu0 0.0
        %754 = vmatpush1.msra.mxu0 0.0
        %755 = vmatprep.subr.mxu0 0.0
        %756 = vmatpush1.msra.mxu0 0.0
        %757 = vmatprep.subr.mxu0 0.0
        %758 = vmatpush1.msra.mxu0 0.0
        %759 = vmatprep.subr.mxu0 0.0
        %760 = vmatpush1.msra.mxu0 0.0
        %761 = vmatprep.subr.mxu0 0.0
        %762 = vmatpush1.msra.mxu0 0.0
        %763 = vmatprep.subr.mxu0 0.0
        %764 = vmatpush1.msra.mxu0 0.0
        %765 = vmatprep.subr.mxu0 0.0
        %766 = vmatpush1.msra.mxu0 0.0
        %767 = vmatprep.subr.mxu0 0.0
        %768 = vmatpush1.msra.mxu0 0.0
        %769 = vmatprep.subr.mxu0 0.0
        %770 = vmatpush1.msra.mxu0 0.0
        %771 = vmatprep.subr.mxu0 0.0
        %772 = vmatpush1.msra.mxu0 0.0
        %773 = vmatprep.subr.mxu0 0.0
        %774 = vmatpush1.msra.mxu0 0.0
        %775 = vmatprep.mubr.f32.mxu0 0.0
        %v776 = vand.u32 %v181, 4294901760
        %777 = vmatmul.mubr.f32.gmra.mrb[0].mxu0 %v776
        %v778 = vpop.f32.mrb[0].mxu0
        %v779 = vadd.f32 %v684, %v778
        %v780 = vpop.f32.mrb[0].mxu0
        %v781 = vadd.f32 %v686, %v780
        %782 = vmatprep.mubr.f32.mxu0 0.0
        %v783 = vand.u32 %v184, 4294901760
        %784 = vmatmul.mubr.f32.gmra.mrb[0].mxu0 %v783
        %v785 = vpop.f32.mrb[0].mxu0
        %v786 = vadd.f32 %v691, %v785
        %v787 = vpop.f32.mrb[0].mxu0
        %v788 = vadd.f32 %v693, %v787
        %789 = vmatprep.mubr.f32.mxu0 0.0
        %v790 = vand.u32 %v187, 4294901760
        %791 = vmatmul.mubr.f32.gmra.mrb[0].mxu0 %v790
        %v792 = vpop.f32.mrb[0].mxu0
        %v793 = vadd.f32 %v698, %v792
        %v794 = vpop.f32.mrb[0].mxu0
        %v795 = vadd.f32 %v700, %v794
        %796 = vmatprep.mubr.f32.mxu0 0.0
        %v797 = vand.u32 %v190, 4294901760
        %798 = vmatmul.mubr.f32.gmra.mrb[0].mxu0 %v797
        %v799 = vpop.f32.mrb[0].mxu0
        %v800 = vadd.f32 %v705, %v799
        %v801 = vpop.f32.mrb[0].mxu0
        %v802 = vadd.f32 %v707, %v801
        %803 = vdwg.mxu0
        %804 = vst [vmem:[%s161] sm:$0xff] %v779
        %805 = vst [vmem:[%s161 + $0x8] sm:$0xff] %v781
        %806 = vst [vmem:[%s161 + $0x10] sm:$0xff] %v786
        %807 = vst [vmem:[%s161 + $0x18] sm:$0xff] %v788
        %808 = vst [vmem:[%s161 + $0x20] sm:$0xff] %v793
        %809 = vst [vmem:[%s161 + $0x28] sm:$0xff] %v795
        %810 = vst [vmem:[%s161 + $0x30] sm:$0xff] %v800
        %811 = vst [vmem:[%s161 + $0x38] sm:$0xff] %v802
        %s812 = sand.u32 %s87, 1
        %s813 = scalar_lea.sflag [#allocation3], %s812
        %s814 = sand.u32 %s87, 1
        %s815 = smul.addr %s814, 64
        %s816 = scalar_lea.vmem [#allocation2], %s815
        // Predicated region
        $region29: #{tpu_custom_call.1} parent=27 // pred_check
          %p817 = pneg %p97
        $region30: #{tpu_custom_call.1} parent=27 // pred_check_branch
          %819 = sbr.rel (%p817) target = $region32
        $region31: #{tpu_custom_call.1} parent=27 // pred_region
          %s820 = smul.u32 2, %s21
          %s822 = ssub.s32 1024, 1024
          %823 = vsyncadd %s813, %s822
          %s824 = smul.addr %s20, 8
          %s825 = sadd.s32 %s820, %s824
          %s826 = smul.addr %s825, 128
          %s827 = scalar_lea.hbm %s2, %s826
          %s828 = sshll.u32 %s816, 4
          %s829 = int_to_ptr.vmem [resolvable:$true] %s828
          %834 = dma.vmem_to_hbm [thread:$0]  %s829, 1024, %s827, %s813, 256, 256, 16
        $region32: #{tpu_custom_call.1} parent=27 // pred_fallthru
          _
      $region28: #{tpu_custom_call.1} parent=5 // pred_fallthru
        _
      %p835 = scmp.le.s32.totalorder 2, %s11
      // Predicated region
      $region33: #{tpu_custom_call.1} parent=5 // pred_check
        %p836 = pneg %p835
      $region34: #{tpu_custom_call.1} parent=5 // pred_check_branch
        %838 = sbr.rel (%p836) target = $region36
      $region35: #{tpu_custom_call.1} parent=5 // pred_region
        %s839 = ssub.s32 %s11, 2
        // Predicated region
        $region37: #{tpu_custom_call.1} parent=35 // pred_check
          %p840 = pneg %p103
        $region38: #{tpu_custom_call.1} parent=35 // pred_check_branch
          %842 = sbr.rel (%p840) target = $region40
        $region39: #{tpu_custom_call.1} parent=35 // pred_region
          %s843 = sand.u32 %s88, 1
          %s844 = scalar_lea.sflag [#allocation3], %s843
          %s845 = sand.u32 %s88, 1
          %s846 = smul.addr %s845, 64
          %s847 = scalar_lea.vmem [#allocation2], %s846
          %848 = dma.done %s844, 1024
        $region40: #{tpu_custom_call.1} parent=35 // pred_fallthru
          _
      $region36: #{tpu_custom_call.1} parent=5 // pred_fallthru
        _
    $region6: #{tpu_custom_call.1} parent=1 // loop_footer
      %s15 = sadd.s32 1, %s11
    $region7: #{tpu_custom_call.1} parent=1 // loop_footer_branch
      %10 = sbr.rel target = $region3
    $region8: #{tpu_custom_call.1} parent=1 // loop_exit
      _
    %849 = vsyncpa [#allocation3], 1
    %s850 = scalar_lea.sflag [#allocation3], 1
    %851 = vsyncpa %s850, 1

</llo_original>
